<compile_context>
chip_gen: v5e
topology: v5e:2x2
jax: 0.10.0
libtpu: 0.0.40
codegen_flags: <defaults>
</compile_context>

<pallas_src>
import math

import jax
import jax.numpy as jnp
from jax.experimental import pallas as pl
from jax.experimental.pallas import tpu as pltpu


def rselfgate_kernel(x1_ref, x2_ref, w1_ref, w2_ref, b_ref, o_ref):
    x1 = x1_ref[...]
    x2 = x2_ref[...]
    mm_dtype = w1_ref.dtype
    # Linear(cat(x1, x2)) = x1 @ w1 + x2 @ w2 + b   (MXU matmuls, f32 accum)
    z = (jnp.dot(x1.astype(mm_dtype), w1_ref[...],
                 preferred_element_type=jnp.float32)
         + jnp.dot(x2.astype(mm_dtype), w2_ref[...],
                   preferred_element_type=jnp.float32)
         + b_ref[...])
    g = jax.nn.sigmoid(z)                               # EUP exp + VPU, f32
    o_ref[...] = (g * x1.astype(jnp.float32)).astype(o_ref.dtype)


def prepare_rselfgate_params(weight, bias, matmul_dtype=jnp.bfloat16):
    """Split/transpose/cast the Linear params once (hoist out of hot path)."""
    isize = weight.shape[0]
    assert weight.shape == (isize, 2 * isize)
    w1 = weight[:, :isize].T.astype(matmul_dtype)       # (isize, isize)
    w2 = weight[:, isize:].T.astype(matmul_dtype)       # (isize, isize)
    b = bias.reshape(1, isize).astype(jnp.float32)      # bias/accum in f32
    return w1, w2, b


def _vmem_limit_bytes(tm, isize, x_bytes, w_bytes, out_bytes):
    weights = 2 * isize * isize * w_bytes + isize * 4         # single-buffered
    streams = 2 * tm * isize * (2 * x_bytes + out_bytes)      # double-buffered
    need = weights + streams + (4 << 20)                      # headroom
    return int(min(64 << 20, max(need, 16 << 20)))            # 64 MiB = v7x phys


def rselfgate_prepared(x1, x2, w1, w2, b, *, row_tile=512):
    assert x1.shape == x2.shape
    isize = x1.shape[-1]
    lead_shape = x1.shape[:-1]
    rows = math.prod(lead_shape) if lead_shape else 1

    x1_2d = x1.reshape(rows, isize)
    x2_2d = x2.reshape(rows, isize)

    # Row tile: as large as row_tile allows (amortize per-step overhead),
    # rounded up to the sublane quantum for the input dtype.
    sub = 8 if x1.dtype.itemsize >= 4 else 16
    tm = min(row_tile, rows)
    tm = ((tm + sub - 1) // sub) * sub
    n_steps = pl.cdiv(rows, tm)
    padded_rows = n_steps * tm
    if padded_rows != rows:
        pad = padded_rows - rows
        x1_2d = jnp.pad(x1_2d, ((0, pad), (0, 0)))
        x2_2d = jnp.pad(x2_2d, ((0, pad), (0, 0)))

    # NOTE: for isize < 128 (e.g. the test's isize=32) the output stores are
    # lane-masked; padding the feature dim to 128 would un-mask them but costs
    # ~4x HBM traffic on x1/out, so the native width is kept here.

    weight_mode = dict(pipeline_mode=pl.Buffered(1))    # grid-invariant blocks

    out = pl.pallas_call(
        rselfgate_kernel,
        out_shape=jax.ShapeDtypeStruct((padded_rows, isize), x1.dtype),
        grid_spec=pltpu.PrefetchScalarGridSpec(
            num_scalar_prefetch=0,
            grid=(n_steps,),
            in_specs=[
                pl.BlockSpec((tm, isize), lambda i: (i, 0)),              # x1
                pl.BlockSpec((tm, isize), lambda i: (i, 0)),              # x2
                pl.BlockSpec((isize, isize), lambda i: (0, 0), **weight_mode),
                pl.BlockSpec((isize, isize), lambda i: (0, 0), **weight_mode),
                pl.BlockSpec((1, isize), lambda i: (0, 0), **weight_mode),
            ],
            out_specs=pl.BlockSpec((tm, isize), lambda i: (i, 0)),
        ),
        compiler_params=pltpu.CompilerParams(
            dimension_semantics=("parallel",),
            vmem_limit_bytes=_vmem_limit_bytes(
                tm, isize, x1.dtype.itemsize, w1.dtype.itemsize,
                x1.dtype.itemsize),
        ),
    )(x1_2d, x2_2d, w1, w2, b)

    if padded_rows != rows:
        out = out[:rows]
    return out.reshape(*lead_shape, isize)


def rselfgate(x1, x2, weight, bias, *, row_tile=512,
              matmul_dtype=jnp.bfloat16):
    """x1, x2: (..., isize). weight: (isize, 2*isize) PyTorch layout. bias: (isize,)."""
    w1, w2, b = prepare_rselfgate_params(weight, bias, matmul_dtype)
    return rselfgate_prepared(x1, x2, w1, w2, b, row_tile=row_tile)


def rselfgate_ref(x1, x2, weight, bias):
    z = jnp.concatenate((x1, x2), axis=-1) @ weight.T + bias
    return jax.nn.sigmoid(z) * x1


if __name__ == "__main__":
    key = jax.random.PRNGKey(0)
    batch, seq, isize = 2, 8, 32

    k1, k2, kw, kb = jax.random.split(key, 4)
    x1 = jax.random.normal(k1, (batch, seq, isize), dtype=jnp.float32)
    x2 = jax.random.normal(k2, (batch, seq, isize), dtype=jnp.float32)

    # deterministic params (PyTorch Linear shapes: W (isize, 2*isize), b (isize,))
    bound = 1.0 / math.sqrt(2.0 * isize)
    weight = jax.random.uniform(kw, (isize, 2 * isize), jnp.float32, -bound, bound)
    bias = jax.random.uniform(kb, (isize,), jnp.float32, -bound, bound)

    ref = rselfgate_ref(x1, x2, weight, bias)

    # default path: bf16 MXU matmuls, f32 accumulation + gating
    out_bf16 = jax.block_until_ready(rselfgate(x1, x2, weight, bias))
    assert out_bf16.shape == ref.shape
    assert jnp.allclose(out_bf16, ref, atol=3e-2, rtol=3e-2)

    # exact path: f32 matmuls
    out_f32 = jax.block_until_ready(
        rselfgate(x1, x2, weight, bias, matmul_dtype=jnp.float32))
    assert jnp.allclose(out_f32, ref, atol=1e-5, rtol=1e-5)

    # ragged row count exercises the cdiv + zero-padding path
    x1r = x1.reshape(-1, isize)[:15]
    x2r = x2.reshape(-1, isize)[:15]
    out_r = jax.block_until_ready(
        rselfgate(x1r, x2r, weight, bias, matmul_dtype=jnp.float32))
    ref_r = rselfgate_ref(x1r, x2r, weight, bias)
    assert jnp.allclose(out_r, ref_r, atol=1e-5, rtol=1e-5)

    print("KERNEL_OK")
</pallas_src>

<mosaic_0001>
module attributes {stable_mosaic.version = 11 : i64} {
  func.func @rselfgate_kernel(%arg0: i32, %arg1: memref<16x32xf32, #tpu.memory_space<vmem>>, %arg2: memref<16x32xf32, #tpu.memory_space<vmem>>, %arg3: memref<32x32xbf16, #tpu.memory_space<vmem>>, %arg4: memref<32x32xbf16, #tpu.memory_space<vmem>>, %arg5: memref<1x32xf32, #tpu.memory_space<vmem>>, %arg6: memref<16x32xf32, #tpu.memory_space<vmem>>) attributes {dimension_semantics = [#tpu.dimension_semantics<parallel>], iteration_bounds = array<i64: 1>, scalar_prefetch = 0 : i64, scratch_operands = 0 : i64, tpu.core_type = #tpu.core_type<tc>, window_params = [{transform_indices = @transform_0, window_bounds = array<i64: 16, 32>}, {transform_indices = @transform_1, window_bounds = array<i64: 16, 32>}, {pipeline_mode = #tpu.pipeline_mode<synchronous>, transform_indices = @transform_2, window_bounds = array<i64: 32, 32>}, {pipeline_mode = #tpu.pipeline_mode<synchronous>, transform_indices = @transform_3, window_bounds = array<i64: 32, 32>}, {pipeline_mode = #tpu.pipeline_mode<synchronous>, transform_indices = @transform_4, window_bounds = array<i64: 1, 32>}, {transform_indices = @transform_5, window_bounds = array<i64: 16, 32>}]} {
    %c0 = arith.constant 0 : index
    %c0_0 = arith.constant 0 : index
    %0 = vector.load %arg1[%c0, %c0_0] : memref<16x32xf32, #tpu.memory_space<vmem>>, vector<16x32xf32>
    %c0_1 = arith.constant 0 : index
    %c0_2 = arith.constant 0 : index
    %1 = vector.load %arg2[%c0_1, %c0_2] : memref<16x32xf32, #tpu.memory_space<vmem>>, vector<16x32xf32>
    %2 = arith.truncf %0 : vector<16x32xf32> to vector<16x32xbf16>
    %c0_3 = arith.constant 0 : index
    %c0_4 = arith.constant 0 : index
    %3 = vector.load %arg3[%c0_3, %c0_4] : memref<32x32xbf16, #tpu.memory_space<vmem>>, vector<32x32xbf16>
    %cst = arith.constant dense<0.000000e+00> : vector<16x32xf32>
    %4 = tpu.matmul %2, %3, %cst {dimension_numbers = #tpu.dot_dimension_numbers<[1], [0], [0], [1], [0, 0, 1, 1], [], []>} : vector<16x32xbf16>, vector<32x32xbf16>, vector<16x32xf32> -> vector<16x32xf32>
    %5 = arith.truncf %1 : vector<16x32xf32> to vector<16x32xbf16>
    %c0_5 = arith.constant 0 : index
    %c0_6 = arith.constant 0 : index
    %6 = vector.load %arg4[%c0_5, %c0_6] : memref<32x32xbf16, #tpu.memory_space<vmem>>, vector<32x32xbf16>
    %cst_7 = arith.constant dense<0.000000e+00> : vector<16x32xf32>
    %7 = tpu.matmul %5, %6, %cst_7 {dimension_numbers = #tpu.dot_dimension_numbers<[1], [0], [0], [1], [0, 0, 1, 1], [], []>} : vector<16x32xbf16>, vector<32x32xbf16>, vector<16x32xf32> -> vector<16x32xf32>
    %8 = arith.addf %4, %7 : vector<16x32xf32>
    %c0_8 = arith.constant 0 : index
    %c0_9 = arith.constant 0 : index
    %9 = vector.load %arg5[%c0_8, %c0_9] : memref<1x32xf32, #tpu.memory_space<vmem>>, vector<1x32xf32>
    %10 = vector.broadcast %9 : vector<1x32xf32> to vector<16x32xf32>
    %11 = arith.addf %8, %10 : vector<16x32xf32>
    %12 = arith.negf %11 : vector<16x32xf32>
    %13 = math.exp %12 : vector<16x32xf32>
    %cst_10 = arith.constant 1.000000e+00 : f32
    %14 = vector.broadcast %cst_10 : f32 to vector<16x32xf32>
    %15 = arith.addf %14, %13 : vector<16x32xf32>
    %16 = arith.divf %14, %15 : vector<16x32xf32>
    %17 = arith.mulf %16, %0 : vector<16x32xf32>
    %c0_11 = arith.constant 0 : index
    %c0_12 = arith.constant 0 : index
    %18 = vector.load %arg6[%c0_11, %c0_12] : memref<16x32xf32, #tpu.memory_space<vmem>>, vector<16x32xf32>
    tpu.vector_store %arg6[%c0_11, %c0_12], %17 {strides = array<i32>} : memref<16x32xf32, #tpu.memory_space<vmem>>, vector<16x32xf32>,
    return
  }
  func.func @transform_0(%arg0: i32) -> (i32, i32) {
    %c0_i32 = arith.constant 0 : i32
    %c0_i32_0 = arith.constant 0 : i32
    return %arg0, %c0_i32 : i32, i32
  }
  func.func @transform_1(%arg0: i32) -> (i32, i32) {
    %c0_i32 = arith.constant 0 : i32
    %c0_i32_0 = arith.constant 0 : i32
    return %arg0, %c0_i32 : i32, i32
  }
  func.func @transform_2(%arg0: i32) -> (i32, i32) {
    %c0_i32 = arith.constant 0 : i32
    %c0_i32_0 = arith.constant 0 : i32
    %c0_i32_1 = arith.constant 0 : i32
    return %c0_i32, %c0_i32_0 : i32, i32
  }
  func.func @transform_3(%arg0: i32) -> (i32, i32) {
    %c0_i32 = arith.constant 0 : i32
    %c0_i32_0 = arith.constant 0 : i32
    %c0_i32_1 = arith.constant 0 : i32
    return %c0_i32, %c0_i32_0 : i32, i32
  }
  func.func @transform_4(%arg0: i32) -> (i32, i32) {
    %c0_i32 = arith.constant 0 : i32
    %c0_i32_0 = arith.constant 0 : i32
    %c0_i32_1 = arith.constant 0 : i32
    return %c0_i32, %c0_i32_0 : i32, i32
  }
  func.func @transform_5(%arg0: i32) -> (i32, i32) {
    %c0_i32 = arith.constant 0 : i32
    %c0_i32_0 = arith.constant 0 : i32
    return %arg0, %c0_i32 : i32, i32
  }
}

</mosaic_0001>

<llo_original>
// kernel: tpu_custom_call.1
$region0: #{tpu_custom_call.1}
  #allocation0 [shape = 'u32[]', space=smem, size = 0x4, offset = 0x4, fixed_abs, tag = 'smem constant byte address 0x4 - core index']
  #allocation1 [shape = 'u32[72,128]{1,0:T(1,128)}', space=vmem, size = 0x9000, scoped, tag = 'internal scratch']
  %s0 = inlined_call_operand.hbm [shape: f32[16,32], index: 0, kind: input, shape index: {}]
  %s1 = inlined_call_operand.hbm [shape: f32[16,32], index: 1, kind: input, shape index: {}]
  %s2 = inlined_call_operand.hbm [shape: bf16[32,32], index: 2, kind: input, shape index: {}]
  %s3 = inlined_call_operand.hbm [shape: bf16[32,32], index: 3, kind: input, shape index: {}]
  %s4 = inlined_call_operand.vmem [shape: f32[1,32], index: 4, kind: input, shape index: {}]
  %s5 = inlined_call_operand.hbm [shape: f32[16,32], index: 5, kind: output, shape index: {}]
  %s6 = sld [smem:[#allocation0]]
  $region46: #{tpu_custom_call.1} parent=0
    _
  %s8 = ssub.s32 1, %s6
  %s9 = scalar_select 0, %s8, %s6
  $region1: #{tpu_custom_call.1} parent=0
    #allocation2 [shape = 'u8[8192]{0}', space=vmem, size = 0x2000, scoped, tag = 'input window, operand 0, single buffered']
    #allocation3 [shape = 's32[1]{0}', space=sflag, size = 0x4, scoped, tag = 'scoped memory for tpu_custom_call.1']
    #allocation4 [shape = 's32[1]{0}', space=sflag, size = 0x4, scoped, tag = 'scoped memory for tpu_custom_call.1']
    #allocation5 [shape = 'u8[8192]{0}', space=vmem, size = 0x2000, scoped, tag = 'input window, operand 1, single buffered']
    #allocation6 [shape = 's32[1]{0}', space=sflag, size = 0x4, scoped, tag = 'scoped memory for tpu_custom_call.1']
    #allocation7 [shape = 'u8[8192]{0}', space=vmem, size = 0x2000, scoped, tag = 'input window, operand 2, single buffered']
    #allocation8 [shape = 'u8[8192]{0}', space=vmem, size = 0x2000, scoped, tag = 'input window, operand 3, single buffered']
    #allocation9 [shape = 's32[1]{0}', space=sflag, size = 0x4, scoped, tag = 'scoped memory for tpu_custom_call.1']
    #allocation10 [shape = 'u8[8192]{0}', space=vmem, size = 0x2000, scoped, tag = 'output window, operand 0, single buffered']
    %10 = vsyncpa [#allocation3], 0
    %11 = vsyncpa [#allocation6], 0
    %12 = vsyncpa [#allocation9], 0
    %13 = vsyncpa [#allocation4], 0
    // Predicated region
    $region2: #{tpu_custom_call.1} parent=1 // pred_check
      _
    $region3: #{tpu_custom_call.1} parent=1 // pred_check_branch
      %15 = sbr.rel (0) target = $region5
    $region4: #{tpu_custom_call.1} parent=1 // pred_region
      %17 = vsyncadd [#allocation3], 0
      %s18 = sshll.u32 %s0, 4
      %s19 = int_to_ptr.hbm [resolvable:$true] %s18
      %s20 = sshll.u32 [#allocation2], 4
      %s21 = int_to_ptr.vmem [resolvable:$true] %s20
      %26 = dma.hbm_to_vmem [thread:$0]  %s19, 256, %s21, [#allocation3], 128, 128, 8
    $region5: #{tpu_custom_call.1} parent=1 // pred_fallthru
      _
    // Predicated region
    $region6: #{tpu_custom_call.1} parent=1 // pred_check
      _
    $region7: #{tpu_custom_call.1} parent=1 // pred_check_branch
      %28 = sbr.rel (0) target = $region9
    $region8: #{tpu_custom_call.1} parent=1 // pred_region
      %30 = vsyncadd [#allocation6], 0
      %s31 = sshll.u32 %s1, 4
      %s32 = int_to_ptr.hbm [resolvable:$true] %s31
      %s33 = sshll.u32 [#allocation5], 4
      %s34 = int_to_ptr.vmem [resolvable:$true] %s33
      %39 = dma.hbm_to_vmem [thread:$0]  %s32, 256, %s34, [#allocation6], 128, 128, 8
    $region9: #{tpu_custom_call.1} parent=1 // pred_fallthru
      _
    // Predicated region
    $region10: #{tpu_custom_call.1} parent=1 // pred_check
      _
    $region11: #{tpu_custom_call.1} parent=1 // pred_check_branch
      %41 = sbr.rel (0) target = $region13
    $region12: #{tpu_custom_call.1} parent=1 // pred_region
      %43 = vsyncadd [#allocation6], 0
      %s44 = sshll.u32 %s2, 4
      %s45 = int_to_ptr.hbm [resolvable:$true] %s44
      %s46 = sshll.u32 [#allocation7], 4
      %s47 = int_to_ptr.vmem [resolvable:$true] %s46
      %52 = dma.hbm_to_vmem [thread:$0]  %s45, 256, %s47, [#allocation6], 64, 64, 4
    $region13: #{tpu_custom_call.1} parent=1 // pred_fallthru
      _
    // Predicated region
    $region14: #{tpu_custom_call.1} parent=1 // pred_check
      _
    $region15: #{tpu_custom_call.1} parent=1 // pred_check_branch
      %54 = sbr.rel (0) target = $region17
    $region16: #{tpu_custom_call.1} parent=1 // pred_region
      %56 = vsyncadd [#allocation9], 0
      %s57 = sshll.u32 %s3, 4
      %s58 = int_to_ptr.hbm [resolvable:$true] %s57
      %s59 = sshll.u32 [#allocation8], 4
      %s60 = int_to_ptr.vmem [resolvable:$true] %s59
      %65 = dma.hbm_to_vmem [thread:$0]  %s58, 256, %s60, [#allocation9], 64, 64, 4
    $region17: #{tpu_custom_call.1} parent=1 // pred_fallthru
      _
    // Predicated region
    $region18: #{tpu_custom_call.1} parent=1 // pred_check
      _
    $region19: #{tpu_custom_call.1} parent=1 // pred_check_branch
      %67 = sbr.rel (0) target = $region21
    $region20: #{tpu_custom_call.1} parent=1 // pred_region
      _
    $region21: #{tpu_custom_call.1} parent=1 // pred_fallthru
      _
    // Predicated region
    $region22: #{tpu_custom_call.1} parent=1 // pred_check
      _
    $region23: #{tpu_custom_call.1} parent=1 // pred_check_branch
      %69 = sbr.rel (0) target = $region25
    $region24: #{tpu_custom_call.1} parent=1 // pred_region
      %71 = dma.done [#allocation3], 256
    $region25: #{tpu_custom_call.1} parent=1 // pred_fallthru
      _
    // Predicated region
    $region26: #{tpu_custom_call.1} parent=1 // pred_check
      _
    $region27: #{tpu_custom_call.1} parent=1 // pred_check_branch
      %73 = sbr.rel (0) target = $region29
    $region28: #{tpu_custom_call.1} parent=1 // pred_region
      %75 = dma.done [#allocation6], 256
    $region29: #{tpu_custom_call.1} parent=1 // pred_fallthru
      _
    // Predicated region
    $region30: #{tpu_custom_call.1} parent=1 // pred_check
      _
    $region31: #{tpu_custom_call.1} parent=1 // pred_check_branch
      %77 = sbr.rel (0) target = $region33
    $region32: #{tpu_custom_call.1} parent=1 // pred_region
      %79 = dma.done [#allocation6], 256
    $region33: #{tpu_custom_call.1} parent=1 // pred_fallthru
      _
    // Predicated region
    $region34: #{tpu_custom_call.1} parent=1 // pred_check
      _
    $region35: #{tpu_custom_call.1} parent=1 // pred_check_branch
      %81 = sbr.rel (0) target = $region37
    $region36: #{tpu_custom_call.1} parent=1 // pred_region
      %83 = dma.done [#allocation9], 256
    $region37: #{tpu_custom_call.1} parent=1 // pred_fallthru
      _
    %v85 = vld [vmem:[#allocation2] sm:$0xff]
    %v86 = vld [vmem:[#allocation2 + $0x8] sm:$0xff]
    %v87 = vld [vmem:[#allocation5] sm:$0xff]
    %v88 = vld [vmem:[#allocation5 + $0x8] sm:$0xff]
    %v89 = vpack.c.bf16 %v86, %v85
    %v90 = vld [vmem:[#allocation7] sm:$0xf]
    %v91 = vld [vmem:[#allocation7 + $0x4] sm:$0xf]
    %v92 = vld [vmem:[#allocation7 + $0x8] sm:$0xf]
    %v93 = vld [vmem:[#allocation7 + $0xc] sm:$0xf]
    %v94 = vpack.c.bf16 %v88, %v87
    %v95 = vld [vmem:[#allocation8] sm:$0xf]
    %v96 = vld [vmem:[#allocation8 + $0x4] sm:$0xf]
    %v97 = vld [vmem:[#allocation8 + $0x8] sm:$0xf]
    %v98 = vld [vmem:[#allocation8 + $0xc] sm:$0xf]
    %v103 = vunpack.c.l.b16 %v95
    %v104 = vunpack.c.l.b16 %v96
    %v105 = vunpack.c.l.b16 %v97
    %v106 = vunpack.c.l.b16 %v98
    %v107 = vpack.c.b16 %v104, %v103
    %v108 = vpack.c.b16 %v106, %v105
    %vm111 = vcmask 261120
    %v113 = vsel %vm111, %v94, 0
    %115 = vmatpush.bf16.msra.mxu0 0
    %116 = vmatpush.bf16.msra.mxu0 0
    %117 = vmatpush.bf16.msra.mxu0 0
    %118 = vmatpush.bf16.msra.mxu0 0
    %119 = vmatpush.bf16.msra.mxu0 0
    %120 = vmatpush.bf16.msra.mxu0 0
    %121 = vmatpush.bf16.msra.mxu0 %v108
    %122 = vmatpush.bf16.msra.mxu0 %v107
    %123 = vmatmul.bf16.gmra.mxu0 %v113
    %v124 = vpop.f32.mrf.mxu0
    %v125 = vadd.f32 0.0, %v124
    %v126 = vpop.f32.mrf.mxu0
    %v127 = vadd.f32 0.0, %v126
    %128 = vdwg.mxu0
    %v133 = vunpack.c.l.b16 %v90
    %v134 = vunpack.c.l.b16 %v91
    %v135 = vunpack.c.l.b16 %v92
    %v136 = vunpack.c.l.b16 %v93
    %v137 = vpack.c.b16 %v134, %v133
    %v138 = vpack.c.b16 %v136, %v135
    %v142 = vsel %vm111, %v89, 0
    %144 = vmatpush.bf16.msra.mxu0 0
    %145 = vmatpush.bf16.msra.mxu0 0
    %146 = vmatpush.bf16.msra.mxu0 0
    %147 = vmatpush.bf16.msra.mxu0 0
    %148 = vmatpush.bf16.msra.mxu0 0
    %149 = vmatpush.bf16.msra.mxu0 0
    %150 = vmatpush.bf16.msra.mxu0 %v138
    %151 = vmatpush.bf16.msra.mxu0 %v137
    %152 = vmatmul.bf16.gmra.mxu0 %v142
    %v153 = vpop.f32.mrf.mxu0
    %v154 = vadd.f32 %v125, %v153
    %v155 = vpop.f32.mrf.mxu0
    %v156 = vadd.f32 %v127, %v155
    %157 = vdwg.mxu0
    %v158 = vld [vmem:[%s4] sm:$0x1]
    %v160 = vperm.slane %v158, 0
    %v162 = vadd.f32 %v154, %v160
    %v163 = vadd.f32 %v156, %v160
    %v164 = vxor.u32 %v162, 2147483648
    %v165 = vxor.u32 %v163, 2147483648
    %v166 = vmul.f32 %v164, 1.442695
    %v167 = vpow.pop %v166
    %v168 = vmul.f32 %v165, 1.442695
    %v169 = vpow.pop %v168
    %v170 = vadd.f32 %v167, 1.0
    %v171 = vadd.f32 %v169, 1.0
    %v172 = vrcp.pop %v170
    %v173 = vmul.f32 %v170, %v172
    %v174 = vsub.f32 1.0, %v173
    %v175 = vmul.f32 %v172, %v174
    %v176 = vadd.f32 %v172, %v175
    %vm177 = vweird.f32 %v170
    %vm178 = vweird.f32 %v172
    %vm179 = vmor %vm177, %vm178
    %v180 = vsel %vm179, %v172, %v176
    %v181 = vand.u32 2147483647, %v170
    %vm182 = vcmp.eq.f32.partialorder %v181, 8.507059e+37
    %v183 = vand.u32 %v170, 2147483648
    %v184 = vor.u32 1.1754944e-38, %v183
    %v185 = vsel %vm182, %v184, %v180
    %v186 = vmul.f32 1.0, %v185
    %v187 = vrcp.pop %v171
    %v188 = vmul.f32 %v171, %v187
    %v189 = vsub.f32 1.0, %v188
    %v190 = vmul.f32 %v187, %v189
    %v191 = vadd.f32 %v187, %v190
    %vm192 = vweird.f32 %v171
    %vm193 = vweird.f32 %v187
    %vm194 = vmor %vm192, %vm193
    %v195 = vsel %vm194, %v187, %v191
    %v196 = vand.u32 2147483647, %v171
    %vm197 = vcmp.eq.f32.partialorder %v196, 8.507059e+37
    %v198 = vand.u32 %v171, 2147483648
    %v199 = vor.u32 1.1754944e-38, %v198
    %v200 = vsel %vm197, %v199, %v195
    %v201 = vmul.f32 1.0, %v200
    %v202 = vmul.f32 %v186, %v85
    %v203 = vmul.f32 %v201, %v86
    %204 = vst.msk [vmem:[#allocation10] sm:$0xff] %vm111, %v202
    %205 = vst.msk [vmem:[#allocation10 + $0x8] sm:$0xff] %vm111, %v203
    // Predicated region
    $region38: #{tpu_custom_call.1} parent=1 // pred_check
      _
    $region39: #{tpu_custom_call.1} parent=1 // pred_check_branch
      %207 = sbr.rel (0) target = $region41
    $region40: #{tpu_custom_call.1} parent=1 // pred_region
      %209 = vsyncadd [#allocation4], 0
      %s210 = sshll.u32 [#allocation10], 4
      %s211 = int_to_ptr.vmem [resolvable:$true] %s210
      %s212 = sshll.u32 %s5, 4
      %s213 = int_to_ptr.hbm [resolvable:$true] %s212
      %218 = dma.vmem_to_hbm [thread:$0]  %s211, 256, %s213, [#allocation4], 128, 128, 8
    $region41: #{tpu_custom_call.1} parent=1 // pred_fallthru
      _
    // Predicated region
    $region42: #{tpu_custom_call.1} parent=1 // pred_check
      _
    $region43: #{tpu_custom_call.1} parent=1 // pred_check_branch
      %220 = sbr.rel (0) target = $region45
    $region44: #{tpu_custom_call.1} parent=1 // pred_region
      %222 = dma.done [#allocation4], 256
    $region45: #{tpu_custom_call.1} parent=1 // pred_fallthru
      _
    %223 = vsyncpa [#allocation3], 1
    %224 = vsyncpa [#allocation6], 1
    %225 = vsyncpa [#allocation9], 1
    %226 = vsyncpa [#allocation4], 1

</llo_original>
